<compile_context>
chip_gen: v5e
topology: v5e:2x2
jax: 0.10.0
libtpu: 0.0.40
codegen_flags: <defaults>
</compile_context>

<pallas_src>
import functools
import math

import jax
import jax.numpy as jnp
from jax.experimental import pallas as pl
from jax.experimental.pallas import tpu as pltpu


def _pick_k_chunk(nk):
    """Flash-loop chunk along nk: <= 512, divides nk; nk itself if small/ragged."""
    if nk <= 512:
        return nk
    for c in (512, 256, 128):
        if nk % c == 0:
            return c
    return nk


def _pick_q_tile(nq, kn, dtype):
    """Largest MXU-friendly query tile dividing nq whose fp32 score tile stays small."""
    min_t = 16 if jnp.dtype(dtype).itemsize < 4 else 8   # bf16: full packed sublanes
    candidates = [t for t in (256, 128, 64, 32, 16, 8) if t >= min_t]
    fitting = [t for t in candidates
               if nq % t == 0 and t * kn * 4 <= (256 << 10)]
    if fitting:
        return fitting[0]
    divisors = [t for t in candidates if nq % t == 0]
    if divisors:
        return divisors[-1]
    return nq   # ragged nq: single (padded) full-extent block


def _ssdpa_kernel(q_ref, k_ref, v_ref, w_ref, b_ref, o_ref, cat_ref, *,
                  h, d_k, d_v, kn, n_chunks, scale):
    """Grid point (b, qi): all heads of one query tile, fused fc_o projection.

    q_ref: (1, h, tq, d_k)     k_ref: (1, h, d_k, nk)     v_ref: (1, h, nk, d_v)
    w_ref: (h*d_v, d_model)    b_ref: (1, d_model)        (whole-array VMEM residents)
    o_ref: (1, tq, d_model)    cat_ref: (tq, h*d_v) fp32 scratch
    """
    for hi in range(h):                               # static unroll; h is small
        # Fold 1/sqrt(d_k) into the small (tq, d_k) Q tile, not the scores.
        qh = q_ref[0, hi] * scale                     # (tq, d_k)

        if n_chunks == 1:
            kh = k_ref[0, hi]                         # (d_k, nk) lane-dense
            vh = v_ref[0, hi]                         # (nk, d_v)
            s = jnp.dot(qh, kh, preferred_element_type=jnp.float32)   # (tq, nk)
            s = s - jnp.max(s, axis=-1, keepdims=True)
            p = jnp.exp(s)
            p = p * pl.reciprocal(jnp.sum(p, axis=-1, keepdims=True), approx=True)
            hv = jnp.dot(p.astype(vh.dtype), vh,
                         preferred_element_type=jnp.float32)          # (tq, d_v)
        else:
            # Flash-style online softmax over nk chunks: bounds the fp32 score
            # tile to (tq, kn) regardless of sequence length.
            m = None
            l = None
            acc = None
            for c in range(n_chunks):
                kc = k_ref[0, hi, :, c * kn:(c + 1) * kn]             # (d_k, kn)
                vc = v_ref[0, hi, c * kn:(c + 1) * kn, :]             # (kn, d_v)
                s = jnp.dot(qh, kc, preferred_element_type=jnp.float32)
                if c == 0:
                    m = jnp.max(s, axis=-1, keepdims=True)
                    p = jnp.exp(s - m)
                    l = jnp.sum(p, axis=-1, keepdims=True)
                    acc = jnp.dot(p.astype(vc.dtype), vc,
                                  preferred_element_type=jnp.float32)
                else:
                    m_new = jnp.maximum(m, jnp.max(s, axis=-1, keepdims=True))
                    alpha = jnp.exp(m - m_new)
                    p = jnp.exp(s - m_new)
                    l = alpha * l + jnp.sum(p, axis=-1, keepdims=True)
                    acc = alpha * acc + jnp.dot(p.astype(vc.dtype), vc,
                                                preferred_element_type=jnp.float32)
                    m = m_new
            hv = acc * pl.reciprocal(l, approx=True)                  # (tq, d_v)

        # Concat this head's output (static lane offset) instead of a shallow
        # per-head fc_o matmul: keeps the projection one d_model-deep MXU push.
        cat_ref[:, hi * d_v:(hi + 1) * d_v] = hv

    # Single fused fc_o projection + bias.
    out = jnp.dot(cat_ref[...].astype(w_ref.dtype), w_ref[...],
                  preferred_element_type=jnp.float32)                 # (tq, d_model)
    o_ref[0] = (out + b_ref[...].astype(jnp.float32)).astype(o_ref.dtype)


def simplified_sdpa(queries, keys, values, w_o, b_o, *, h):
    """queries: (b_s, nq, d_model); keys/values: (b_s, nk, d_model).

    w_o is the fc_o weight in PyTorch layout (d_model, h*d_v); b_o is (d_model,).
    """
    b_s, nq, d_model = queries.shape
    nk = keys.shape[1]
    d_k = d_model // h
    d_v = d_model // h

    # Head-major layouts (one XLA copy each in the wrapper, amortized over the
    # kernel).  K is pre-transposed so the in-kernel score matmul is a native
    # (M,K)x(K,N) feed with nk on the lane axis.
    q = queries.reshape(b_s, nq, h, d_k).transpose(0, 2, 1, 3)    # (b, h, nq, d_k)
    k = keys.reshape(b_s, nk, h, d_k).transpose(0, 2, 3, 1)       # (b, h, d_k, nk)
    v = values.reshape(b_s, nk, h, d_v).transpose(0, 2, 1, 3)     # (b, h, nk, d_v)
    w_t = jnp.transpose(w_o)                                      # (h*d_v, d_model)
    bias = b_o.reshape(1, d_model)

    kn = _pick_k_chunk(nk)
    n_chunks = nk // kn if nk % kn == 0 else 1
    if n_chunks == 1:
        kn = nk
    tq = _pick_q_tile(nq, kn, queries.dtype)
    nq_blocks = max(nq // tq, 1)

    kernel = functools.partial(
        _ssdpa_kernel, h=h, d_k=d_k, d_v=d_v, kn=kn, n_chunks=n_chunks,
        scale=1.0 / math.sqrt(d_k))

    # VMEM budget: double-buffered Q/K/V/out tiles + single-copy weight/bias +
    # fp32 concat scratch + score-tile headroom.
    itemsize = jnp.dtype(queries.dtype).itemsize
    vmem_est = (
        2 * h * tq * d_k * itemsize
        + 2 * h * d_k * nk * itemsize
        + 2 * h * nk * d_v * itemsize
        + d_model * d_model * itemsize
        + d_model * itemsize
        + 2 * tq * d_model * itemsize
        + tq * d_model * 4
        + 4 * tq * kn * 4
    )
    vmem_limit = min(64 << 20, max(int(1.5 * vmem_est) + (2 << 20), 32 << 20))

    cost = pl.CostEstimate(
        flops=2 * b_s * h * nq * nk * (d_k + d_v) + 2 * b_s * nq * d_model * d_model,
        transcendentals=b_s * h * nq * nk,
        bytes_accessed=itemsize * (queries.size + keys.size + values.size
                                   + w_o.size + b_o.size + b_s * nq * d_model),
    )

    return pl.pallas_call(
        kernel,
        out_shape=jax.ShapeDtypeStruct((b_s, nq, d_model), queries.dtype),
        grid_spec=pltpu.PrefetchScalarGridSpec(
            num_scalar_prefetch=0,
            grid=(b_s, nq_blocks),
            in_specs=[
                pl.BlockSpec((1, h, tq, d_k), lambda b, qi: (b, 0, qi, 0)),
                # K/V block index depends only on b -> not re-fetched per query tile.
                pl.BlockSpec((1, h, d_k, nk), lambda b, qi: (b, 0, 0, 0)),
                pl.BlockSpec((1, h, nk, d_v), lambda b, qi: (b, 0, 0, 0)),
                # fc_o weight/bias: whole-array VMEM residents (single copy,
                # no pipeline double buffer).
                pl.BlockSpec(memory_space=pltpu.MemorySpace.VMEM),
                pl.BlockSpec(memory_space=pltpu.MemorySpace.VMEM),
            ],
            out_specs=pl.BlockSpec((1, tq, d_model), lambda b, qi: (b, qi, 0)),
            scratch_shapes=[pltpu.VMEM((tq, h * d_v), jnp.float32)],
        ),
        compiler_params=pltpu.CompilerParams(
            dimension_semantics=("parallel", "parallel"),
            vmem_limit_bytes=vmem_limit),
        cost_estimate=cost,
    )(q, k, v, w_t, bias)


def _reference(queries, keys, values, w_o, b_o, *, h):
    """Pure-JAX reference mirroring the PyTorch forward (eval mode)."""
    b_s, nq, d_model = queries.shape
    nk = keys.shape[1]
    d_k = d_model // h
    d_v = d_model // h
    q = queries.reshape(b_s, nq, h, d_k).transpose(0, 2, 1, 3)    # (b,h,nq,dk)
    k = keys.reshape(b_s, nk, h, d_k).transpose(0, 2, 3, 1)       # (b,h,dk,nk)
    v = values.reshape(b_s, nk, h, d_v).transpose(0, 2, 1, 3)     # (b,h,nk,dv)
    att = jnp.matmul(q, k) / jnp.sqrt(jnp.float32(d_k))
    att = jax.nn.softmax(att, axis=-1)
    out = jnp.matmul(att, v).transpose(0, 2, 1, 3).reshape(b_s, nq, h * d_v)
    return out @ w_o.T + b_o


if __name__ == "__main__":
    def run_case(b_s, nq, nk, d_model, h):
        key = jax.random.PRNGKey(0)
        kq, kk, kv, kw = jax.random.split(key, 4)
        queries = jax.random.normal(kq, (b_s, nq, d_model), dtype=jnp.float32)
        keys = jax.random.normal(kk, (b_s, nk, d_model), dtype=jnp.float32)
        values = jax.random.normal(kv, (b_s, nk, d_model), dtype=jnp.float32)
        # fc_o init: weight ~ Normal(0, 0.001), bias = 0 (matches init_weights()).
        w_o = 0.001 * jax.random.normal(kw, (d_model, h * (d_model // h)),
                                        dtype=jnp.float32)
        b_o = jnp.zeros((d_model,), dtype=jnp.float32)

        out = jax.block_until_ready(
            simplified_sdpa(queries, keys, values, w_o, b_o, h=h))
        ref = _reference(queries, keys, values, w_o, b_o, h=h)
        assert out.shape == (b_s, nq, d_model)
        # Tolerance covers the EUP approximate reciprocal + default TPU matmul
        # precision differences between the kernel and the XLA reference.
        assert jnp.allclose(out, ref, atol=1.5e-3, rtol=2e-2), (
            float(jnp.max(jnp.abs(out - ref))))

    # Small shapes consistent with the module: d_model=32, h=4 -> d_k=d_v=8.
    run_case(b_s=2, nq=8, nk=8, d_model=32, h=4)
    # Larger case exercising the flash nk loop (2 chunks of 512) and tq=128 tiles.
    run_case(b_s=2, nq=256, nk=1024, d_model=256, h=4)

    print("KERNEL_OK")
</pallas_src>

<mosaic_0001>
module attributes {stable_mosaic.version = 11 : i64} {
  func.func @_ssdpa_kernel(%arg0: i32, %arg1: i32, %arg2: memref<1x4x8x8xf32, #tpu.memory_space<vmem>>, %arg3: memref<1x4x8x8xf32, #tpu.memory_space<vmem>>, %arg4: memref<1x4x8x8xf32, #tpu.memory_space<vmem>>, %arg5: memref<32x32xf32, #tpu.memory_space<vmem>>, %arg6: memref<1x32xf32, #tpu.memory_space<vmem>>, %arg7: memref<1x8x32xf32, #tpu.memory_space<vmem>>, %arg8: memref<8x32xf32, #tpu.memory_space<vmem>>) attributes {dimension_semantics = [#tpu.dimension_semantics<parallel>, #tpu.dimension_semantics<parallel>], iteration_bounds = array<i64: 2, 1>, scalar_prefetch = 0 : i64, scratch_operands = 1 : i64, tpu.core_type = #tpu.core_type<tc>, window_params = [{transform_indices = @transform_0, window_bounds = array<i64: 1, 4, 8, 8>}, {transform_indices = @transform_1, window_bounds = array<i64: 1, 4, 8, 8>}, {transform_indices = @transform_2, window_bounds = array<i64: 1, 4, 8, 8>}, {pipeline_mode = #tpu.pipeline_mode<synchronous>, transform_indices = @transform_3, window_bounds = array<i64: 32, 32>}, {pipeline_mode = #tpu.pipeline_mode<synchronous>, transform_indices = @transform_4, window_bounds = array<i64: 1, 32>}, {transform_indices = @transform_5, window_bounds = array<i64: 1, 8, 32>}]} {
    %c0 = arith.constant 0 : index
    %c0_0 = arith.constant 0 : index
    %c0_1 = arith.constant 0 : index
    %c0_2 = arith.constant 0 : index
    %0 = vector.load %arg2[%c0, %c0_0, %c0_1, %c0_2] : memref<1x4x8x8xf32, #tpu.memory_space<vmem>>, vector<1x1x8x8xf32>
    %1 = vector.shape_cast %0 : vector<1x1x8x8xf32> to vector<8x8xf32>
    %cst = arith.constant 0.353553385 : f32
    %2 = vector.broadcast %cst : f32 to vector<8x8xf32>
    %3 = arith.mulf %1, %2 : vector<8x8xf32>
    %c0_3 = arith.constant 0 : index
    %c0_4 = arith.constant 0 : index
    %c0_5 = arith.constant 0 : index
    %c0_6 = arith.constant 0 : index
    %4 = vector.load %arg3[%c0_3, %c0_4, %c0_5, %c0_6] : memref<1x4x8x8xf32, #tpu.memory_space<vmem>>, vector<1x1x8x8xf32>
    %5 = vector.shape_cast %4 : vector<1x1x8x8xf32> to vector<8x8xf32>
    %c0_7 = arith.constant 0 : index
    %c0_8 = arith.constant 0 : index
    %c0_9 = arith.constant 0 : index
    %c0_10 = arith.constant 0 : index
    %6 = vector.load %arg4[%c0_7, %c0_8, %c0_9, %c0_10] : memref<1x4x8x8xf32, #tpu.memory_space<vmem>>, vector<1x1x8x8xf32>
    %7 = vector.shape_cast %6 : vector<1x1x8x8xf32> to vector<8x8xf32>
    %cst_11 = arith.constant dense<0.000000e+00> : vector<8x8xf32>
    %8 = tpu.matmul %3, %5, %cst_11 {dimension_numbers = #tpu.dot_dimension_numbers<[1], [0], [0], [1], [0, 0, 1, 1], [], []>} : vector<8x8xf32>, vector<8x8xf32>, vector<8x8xf32> -> vector<8x8xf32>
    %cst_12 = arith.constant dense<0xFF800000> : vector<8xf32>
    %9 = vector.multi_reduction <maximumf>, %8, %cst_12 [1] : vector<8x8xf32> to vector<8xf32>
    %10 = vector.shape_cast %9 : vector<8xf32> to vector<8x1xf32>
    %11 = vector.broadcast %10 : vector<8x1xf32> to vector<8x8xf32>
    %12 = arith.subf %8, %11 : vector<8x8xf32>
    %13 = math.exp %12 : vector<8x8xf32>
    %cst_13 = arith.constant dense<0.000000e+00> : vector<8xf32>
    %14 = vector.multi_reduction <add>, %13, %cst_13 [1] : vector<8x8xf32> to vector<8xf32>
    %15 = vector.shape_cast %14 : vector<8xf32> to vector<8x1xf32>
    %16 = tpu.reciprocal %15 {approx = true} : vector<8x1xf32> -> vector<8x1xf32>
    %17 = vector.broadcast %16 : vector<8x1xf32> to vector<8x8xf32>
    %18 = arith.mulf %13, %17 : vector<8x8xf32>
    %cst_14 = arith.constant dense<0.000000e+00> : vector<8x8xf32>
    %19 = tpu.matmul %18, %7, %cst_14 {dimension_numbers = #tpu.dot_dimension_numbers<[1], [0], [0], [1], [0, 0, 1, 1], [], []>} : vector<8x8xf32>, vector<8x8xf32>, vector<8x8xf32> -> vector<8x8xf32>
    %c0_15 = arith.constant 0 : index
    %c0_16 = arith.constant 0 : index
    %20 = vector.load %arg8[%c0_15, %c0_16] : memref<8x32xf32, #tpu.memory_space<vmem>>, vector<8x8xf32>
    tpu.vector_store %arg8[%c0_15, %c0_16], %19 {strides = array<i32>} : memref<8x32xf32, #tpu.memory_space<vmem>>, vector<8x8xf32>,
    %c0_17 = arith.constant 0 : index
    %c1 = arith.constant 1 : index
    %c0_18 = arith.constant 0 : index
    %c0_19 = arith.constant 0 : index
    %21 = vector.load %arg2[%c0_17, %c1, %c0_18, %c0_19] : memref<1x4x8x8xf32, #tpu.memory_space<vmem>>, vector<1x1x8x8xf32>
    %22 = vector.shape_cast %21 : vector<1x1x8x8xf32> to vector<8x8xf32>
    %cst_20 = arith.constant 0.353553385 : f32
    %23 = vector.broadcast %cst_20 : f32 to vector<8x8xf32>
    %24 = arith.mulf %22, %23 : vector<8x8xf32>
    %c0_21 = arith.constant 0 : index
    %c1_22 = arith.constant 1 : index
    %c0_23 = arith.constant 0 : index
    %c0_24 = arith.constant 0 : index
    %25 = vector.load %arg3[%c0_21, %c1_22, %c0_23, %c0_24] : memref<1x4x8x8xf32, #tpu.memory_space<vmem>>, vector<1x1x8x8xf32>
    %26 = vector.shape_cast %25 : vector<1x1x8x8xf32> to vector<8x8xf32>
    %c0_25 = arith.constant 0 : index
    %c1_26 = arith.constant 1 : index
    %c0_27 = arith.constant 0 : index
    %c0_28 = arith.constant 0 : index
    %27 = vector.load %arg4[%c0_25, %c1_26, %c0_27, %c0_28] : memref<1x4x8x8xf32, #tpu.memory_space<vmem>>, vector<1x1x8x8xf32>
    %28 = vector.shape_cast %27 : vector<1x1x8x8xf32> to vector<8x8xf32>
    %cst_29 = arith.constant dense<0.000000e+00> : vector<8x8xf32>
    %29 = tpu.matmul %24, %26, %cst_29 {dimension_numbers = #tpu.dot_dimension_numbers<[1], [0], [0], [1], [0, 0, 1, 1], [], []>} : vector<8x8xf32>, vector<8x8xf32>, vector<8x8xf32> -> vector<8x8xf32>
    %cst_30 = arith.constant dense<0xFF800000> : vector<8xf32>
    %30 = vector.multi_reduction <maximumf>, %29, %cst_30 [1] : vector<8x8xf32> to vector<8xf32>
    %31 = vector.shape_cast %30 : vector<8xf32> to vector<8x1xf32>
    %32 = vector.broadcast %31 : vector<8x1xf32> to vector<8x8xf32>
    %33 = arith.subf %29, %32 : vector<8x8xf32>
    %34 = math.exp %33 : vector<8x8xf32>
    %cst_31 = arith.constant dense<0.000000e+00> : vector<8xf32>
    %35 = vector.multi_reduction <add>, %34, %cst_31 [1] : vector<8x8xf32> to vector<8xf32>
    %36 = vector.shape_cast %35 : vector<8xf32> to vector<8x1xf32>
    %37 = tpu.reciprocal %36 {approx = true} : vector<8x1xf32> -> vector<8x1xf32>
    %38 = vector.broadcast %37 : vector<8x1xf32> to vector<8x8xf32>
    %39 = arith.mulf %34, %38 : vector<8x8xf32>
    %cst_32 = arith.constant dense<0.000000e+00> : vector<8x8xf32>
    %40 = tpu.matmul %39, %28, %cst_32 {dimension_numbers = #tpu.dot_dimension_numbers<[1], [0], [0], [1], [0, 0, 1, 1], [], []>} : vector<8x8xf32>, vector<8x8xf32>, vector<8x8xf32> -> vector<8x8xf32>
    %c0_33 = arith.constant 0 : index
    %c8 = arith.constant 8 : index
    %41 = vector.load %arg8[%c0_33, %c8] : memref<8x32xf32, #tpu.memory_space<vmem>>, vector<8x8xf32>
    tpu.vector_store %arg8[%c0_33, %c8], %40 {strides = array<i32>} : memref<8x32xf32, #tpu.memory_space<vmem>>, vector<8x8xf32>,
    %c0_34 = arith.constant 0 : index
    %c2 = arith.constant 2 : index
    %c0_35 = arith.constant 0 : index
    %c0_36 = arith.constant 0 : index
    %42 = vector.load %arg2[%c0_34, %c2, %c0_35, %c0_36] : memref<1x4x8x8xf32, #tpu.memory_space<vmem>>, vector<1x1x8x8xf32>
    %43 = vector.shape_cast %42 : vector<1x1x8x8xf32> to vector<8x8xf32>
    %cst_37 = arith.constant 0.353553385 : f32
    %44 = vector.broadcast %cst_37 : f32 to vector<8x8xf32>
    %45 = arith.mulf %43, %44 : vector<8x8xf32>
    %c0_38 = arith.constant 0 : index
    %c2_39 = arith.constant 2 : index
    %c0_40 = arith.constant 0 : index
    %c0_41 = arith.constant 0 : index
    %46 = vector.load %arg3[%c0_38, %c2_39, %c0_40, %c0_41] : memref<1x4x8x8xf32, #tpu.memory_space<vmem>>, vector<1x1x8x8xf32>
    %47 = vector.shape_cast %46 : vector<1x1x8x8xf32> to vector<8x8xf32>
    %c0_42 = arith.constant 0 : index
    %c2_43 = arith.constant 2 : index
    %c0_44 = arith.constant 0 : index
    %c0_45 = arith.constant 0 : index
    %48 = vector.load %arg4[%c0_42, %c2_43, %c0_44, %c0_45] : memref<1x4x8x8xf32, #tpu.memory_space<vmem>>, vector<1x1x8x8xf32>
    %49 = vector.shape_cast %48 : vector<1x1x8x8xf32> to vector<8x8xf32>
    %cst_46 = arith.constant dense<0.000000e+00> : vector<8x8xf32>
    %50 = tpu.matmul %45, %47, %cst_46 {dimension_numbers = #tpu.dot_dimension_numbers<[1], [0], [0], [1], [0, 0, 1, 1], [], []>} : vector<8x8xf32>, vector<8x8xf32>, vector<8x8xf32> -> vector<8x8xf32>
    %cst_47 = arith.constant dense<0xFF800000> : vector<8xf32>
    %51 = vector.multi_reduction <maximumf>, %50, %cst_47 [1] : vector<8x8xf32> to vector<8xf32>
    %52 = vector.shape_cast %51 : vector<8xf32> to vector<8x1xf32>
    %53 = vector.broadcast %52 : vector<8x1xf32> to vector<8x8xf32>
    %54 = arith.subf %50, %53 : vector<8x8xf32>
    %55 = math.exp %54 : vector<8x8xf32>
    %cst_48 = arith.constant dense<0.000000e+00> : vector<8xf32>
    %56 = vector.multi_reduction <add>, %55, %cst_48 [1] : vector<8x8xf32> to vector<8xf32>
    %57 = vector.shape_cast %56 : vector<8xf32> to vector<8x1xf32>
    %58 = tpu.reciprocal %57 {approx = true} : vector<8x1xf32> -> vector<8x1xf32>
    %59 = vector.broadcast %58 : vector<8x1xf32> to vector<8x8xf32>
    %60 = arith.mulf %55, %59 : vector<8x8xf32>
    %cst_49 = arith.constant dense<0.000000e+00> : vector<8x8xf32>
    %61 = tpu.matmul %60, %49, %cst_49 {dimension_numbers = #tpu.dot_dimension_numbers<[1], [0], [0], [1], [0, 0, 1, 1], [], []>} : vector<8x8xf32>, vector<8x8xf32>, vector<8x8xf32> -> vector<8x8xf32>
    %c0_50 = arith.constant 0 : index
    %c16 = arith.constant 16 : index
    %62 = vector.load %arg8[%c0_50, %c16] : memref<8x32xf32, #tpu.memory_space<vmem>>, vector<8x8xf32>
    tpu.vector_store %arg8[%c0_50, %c16], %61 {strides = array<i32>} : memref<8x32xf32, #tpu.memory_space<vmem>>, vector<8x8xf32>,
    %c0_51 = arith.constant 0 : index
    %c3 = arith.constant 3 : index
    %c0_52 = arith.constant 0 : index
    %c0_53 = arith.constant 0 : index
    %63 = vector.load %arg2[%c0_51, %c3, %c0_52, %c0_53] : memref<1x4x8x8xf32, #tpu.memory_space<vmem>>, vector<1x1x8x8xf32>
    %64 = vector.shape_cast %63 : vector<1x1x8x8xf32> to vector<8x8xf32>
    %cst_54 = arith.constant 0.353553385 : f32
    %65 = vector.broadcast %cst_54 : f32 to vector<8x8xf32>
    %66 = arith.mulf %64, %65 : vector<8x8xf32>
    %c0_55 = arith.constant 0 : index
    %c3_56 = arith.constant 3 : index
    %c0_57 = arith.constant 0 : index
    %c0_58 = arith.constant 0 : index
    %67 = vector.load %arg3[%c0_55, %c3_56, %c0_57, %c0_58] : memref<1x4x8x8xf32, #tpu.memory_space<vmem>>, vector<1x1x8x8xf32>
    %68 = vector.shape_cast %67 : vector<1x1x8x8xf32> to vector<8x8xf32>
    %c0_59 = arith.constant 0 : index
    %c3_60 = arith.constant 3 : index
    %c0_61 = arith.constant 0 : index
    %c0_62 = arith.constant 0 : index
    %69 = vector.load %arg4[%c0_59, %c3_60, %c0_61, %c0_62] : memref<1x4x8x8xf32, #tpu.memory_space<vmem>>, vector<1x1x8x8xf32>
    %70 = vector.shape_cast %69 : vector<1x1x8x8xf32> to vector<8x8xf32>
    %cst_63 = arith.constant dense<0.000000e+00> : vector<8x8xf32>
    %71 = tpu.matmul %66, %68, %cst_63 {dimension_numbers = #tpu.dot_dimension_numbers<[1], [0], [0], [1], [0, 0, 1, 1], [], []>} : vector<8x8xf32>, vector<8x8xf32>, vector<8x8xf32> -> vector<8x8xf32>
    %cst_64 = arith.constant dense<0xFF800000> : vector<8xf32>
    %72 = vector.multi_reduction <maximumf>, %71, %cst_64 [1] : vector<8x8xf32> to vector<8xf32>
    %73 = vector.shape_cast %72 : vector<8xf32> to vector<8x1xf32>
    %74 = vector.broadcast %73 : vector<8x1xf32> to vector<8x8xf32>
    %75 = arith.subf %71, %74 : vector<8x8xf32>
    %76 = math.exp %75 : vector<8x8xf32>
    %cst_65 = arith.constant dense<0.000000e+00> : vector<8xf32>
    %77 = vector.multi_reduction <add>, %76, %cst_65 [1] : vector<8x8xf32> to vector<8xf32>
    %78 = vector.shape_cast %77 : vector<8xf32> to vector<8x1xf32>
    %79 = tpu.reciprocal %78 {approx = true} : vector<8x1xf32> -> vector<8x1xf32>
    %80 = vector.broadcast %79 : vector<8x1xf32> to vector<8x8xf32>
    %81 = arith.mulf %76, %80 : vector<8x8xf32>
    %cst_66 = arith.constant dense<0.000000e+00> : vector<8x8xf32>
    %82 = tpu.matmul %81, %70, %cst_66 {dimension_numbers = #tpu.dot_dimension_numbers<[1], [0], [0], [1], [0, 0, 1, 1], [], []>} : vector<8x8xf32>, vector<8x8xf32>, vector<8x8xf32> -> vector<8x8xf32>
    %c0_67 = arith.constant 0 : index
    %c24 = arith.constant 24 : index
    %83 = vector.load %arg8[%c0_67, %c24] : memref<8x32xf32, #tpu.memory_space<vmem>>, vector<8x8xf32>
    tpu.vector_store %arg8[%c0_67, %c24], %82 {strides = array<i32>} : memref<8x32xf32, #tpu.memory_space<vmem>>, vector<8x8xf32>,
    %c0_68 = arith.constant 0 : index
    %c0_69 = arith.constant 0 : index
    %84 = vector.load %arg8[%c0_68, %c0_69] : memref<8x32xf32, #tpu.memory_space<vmem>>, vector<8x32xf32>
    %c0_70 = arith.constant 0 : index
    %c0_71 = arith.constant 0 : index
    %85 = vector.load %arg5[%c0_70, %c0_71] : memref<32x32xf32, #tpu.memory_space<vmem>>, vector<32x32xf32>
    %cst_72 = arith.constant dense<0.000000e+00> : vector<8x32xf32>
    %86 = tpu.matmul %84, %85, %cst_72 {dimension_numbers = #tpu.dot_dimension_numbers<[1], [0], [0], [1], [0, 0, 1, 1], [], []>} : vector<8x32xf32>, vector<32x32xf32>, vector<8x32xf32> -> vector<8x32xf32>
    %c0_73 = arith.constant 0 : index
    %c0_74 = arith.constant 0 : index
    %87 = vector.load %arg6[%c0_73, %c0_74] : memref<1x32xf32, #tpu.memory_space<vmem>>, vector<1x32xf32>
    %88 = vector.broadcast %87 : vector<1x32xf32> to vector<8x32xf32>
    %89 = arith.addf %86, %88 : vector<8x32xf32>
    %c0_75 = arith.constant 0 : index
    %c0_76 = arith.constant 0 : index
    %c0_77 = arith.constant 0 : index
    %90 = vector.load %arg7[%c0_75, %c0_76, %c0_77] : memref<1x8x32xf32, #tpu.memory_space<vmem>>, vector<1x8x32xf32>
    %91 = vector.shape_cast %90 : vector<1x8x32xf32> to vector<8x32xf32>
    %92 = vector.shape_cast %89 : vector<8x32xf32> to vector<1x8x32xf32>
    tpu.vector_store %arg7[%c0_75, %c0_76, %c0_77], %92 {strides = array<i32>} : memref<1x8x32xf32, #tpu.memory_space<vmem>>, vector<1x8x32xf32>,
    return
  }
  func.func @transform_0(%arg0: i32, %arg1: i32) -> (i32, i32, i32, i32) {
    %c0_i32 = arith.constant 0 : i32
    %c0_i32_0 = arith.constant 0 : i32
    %c0_i32_1 = arith.constant 0 : i32
    return %arg0, %c0_i32, %arg1, %c0_i32_0 : i32, i32, i32, i32
  }
  func.func @transform_1(%arg0: i32, %arg1: i32) -> (i32, i32, i32, i32) {
    %c0_i32 = arith.constant 0 : i32
    %c0_i32_0 = arith.constant 0 : i32
    %c0_i32_1 = arith.constant 0 : i32
    %c0_i32_2 = arith.constant 0 : i32
    return %arg0, %c0_i32, %c0_i32_0, %c0_i32_1 : i32, i32, i32, i32
  }
  func.func @transform_2(%arg0: i32, %arg1: i32) -> (i32, i32, i32, i32) {
    %c0_i32 = arith.constant 0 : i32
    %c0_i32_0 = arith.constant 0 : i32
    %c0_i32_1 = arith.constant 0 : i32
    %c0_i32_2 = arith.constant 0 : i32
    return %arg0, %c0_i32, %c0_i32_0, %c0_i32_1 : i32, i32, i32, i32
  }
  func.func @transform_3(%arg0: i32, %arg1: i32) -> (i32, i32) {
    %c0_i32 = arith.constant 0 : i32
    %c0_i32_0 = arith.constant 0 : i32
    %c0_i32_1 = arith.constant 0 : i32
    return %c0_i32, %c0_i32_0 : i32, i32
  }
  func.func @transform_4(%arg0: i32, %arg1: i32) -> (i32, i32) {
    %c0_i32 = arith.constant 0 : i32
    %c0_i32_0 = arith.constant 0 : i32
    %c0_i32_1 = arith.constant 0 : i32
    return %c0_i32, %c0_i32_0 : i32, i32
  }
  func.func @transform_5(%arg0: i32, %arg1: i32) -> (i32, i32, i32) {
    %c0_i32 = arith.constant 0 : i32
    %c0_i32_0 = arith.constant 0 : i32
    return %arg0, %arg1, %c0_i32 : i32, i32, i32
  }
}

</mosaic_0001>

<llo_original>
// kernel: tpu_custom_call.1
$region0: #{tpu_custom_call.1}
  #allocation0 [shape = 'u32[]', space=smem, size = 0x4, offset = 0x4, fixed_abs, tag = 'smem constant byte address 0x4 - core index']
  #allocation1 [shape = 'u32[72,128]{1,0:T(1,128)}', space=vmem, size = 0x9000, scoped, tag = 'internal scratch']
  #allocation2 [shape = 'f32[8,32]{1,0:T(8,128)}', space=vmem, size = 0x1000, scoped, tag = 'scratch operand']
  %s0 = inlined_call_operand.hbm [shape: f32[2,4,8,8], index: 0, kind: input, shape index: {}]
  %s1 = inlined_call_operand.hbm [shape: f32[2,4,8,8], index: 1, kind: input, shape index: {}]
  %s2 = inlined_call_operand.hbm [shape: f32[2,4,8,8], index: 2, kind: input, shape index: {}]
  %s3 = inlined_call_operand.hbm [shape: f32[32,32], index: 3, kind: input, shape index: {}]
  %s4 = inlined_call_operand.vmem [shape: f32[1,32], index: 4, kind: input, shape index: {}]
  %s5 = inlined_call_operand.hbm [shape: f32[2,8,32], index: 5, kind: output, shape index: {}]
  %s6 = sld [smem:[#allocation0]]
  $region69: #{tpu_custom_call.1} parent=0
    _
  %s8 = ssub.s32 1, %s6
  %s9 = scalar_select 0, %s8, %s6
  $region1: #{tpu_custom_call.1} parent=0
    #allocation3 [shape = 'u8[32768]{0}', space=vmem, size = 0x8000, scoped, tag = 'input window, operand 0']
    #allocation4 [shape = 's32[2]{0}', space=sflag, size = 0x8, scoped, tag = 'scoped memory for tpu_custom_call.1']
    #allocation5 [shape = 's32[2]{0}', space=sflag, size = 0x8, scoped, tag = 'scoped memory for tpu_custom_call.1']
    #allocation6 [shape = 'u8[32768]{0}', space=vmem, size = 0x8000, scoped, tag = 'input window, operand 1']
    #allocation7 [shape = 's32[2]{0}', space=sflag, size = 0x8, scoped, tag = 'scoped memory for tpu_custom_call.1']
    #allocation8 [shape = 'u8[32768]{0}', space=vmem, size = 0x8000, scoped, tag = 'input window, operand 2']
    #allocation9 [shape = 'u8[16384]{0}', space=vmem, size = 0x4000, scoped, tag = 'input window, operand 3, single buffered']
    #allocation10 [shape = 's32[1]{0}', space=sflag, size = 0x4, scoped, tag = 'scoped memory for tpu_custom_call.1']
    #allocation11 [shape = 'u8[8192]{0}', space=vmem, size = 0x2000, scoped, tag = 'output window, operand 0']
    %10 = vsyncpa [#allocation4], 0
    %s11 = scalar_lea.sflag [#allocation4], 1
    %12 = vsyncpa %s11, 0
    %13 = vsyncpa [#allocation7], 0
    %s14 = scalar_lea.sflag [#allocation7], 1
    %15 = vsyncpa %s14, 0
    %16 = vsyncpa [#allocation10], 0
    %17 = vsyncpa [#allocation5], 0
    %s18 = scalar_lea.sflag [#allocation5], 1
    %19 = vsyncpa %s18, 0
    loop: start=0, step=1, limit=4
    $region2: #{tpu_custom_call.1} parent=1 // loop_pre_header
      _
    $region3: #{tpu_custom_call.1} parent=1 // loop_header
      %s21 = sphi 0, %s25
      %p22 = scmp.ge.s32.totalorder %s21, 4
      %s28 = sphi 0, %s40
      %s29 = sphi 0, %s36
      %s30 = sphi 0, %s28
      %s31 = sphi 0, %s29
      %s32 = sphi 0, %s30
      %s33 = sphi 0, %s31
      %s45 = sphi 0, %s47
      %s48 = sphi 0, %s45
      %s49 = sphi 0, %s48
      %s65 = sphi 0, %s49
      %s71 = sphi 0, %s73
      %s74 = sphi 0, %s71
      %s75 = sphi 0, %s74
      %s91 = sphi 0, %s75
      %s97 = sphi 0, %s99
      %s100 = sphi 0, %s97
      %s101 = sphi 0, %s100
      %s117 = sphi 0, %s101
      %s121 = sphi 0, %s121
      %s123 = sphi 0, %s121
      %s124 = sphi 0, %s123
      %s138 = sphi 0, %s124
      %s142 = sphi 0, %s142
      %s144 = sphi 0, %s142
      %s145 = sphi 0, %s144
      %s159 = sphi 0, %s145
      %s167 = sphi 0, %s169
      %s170 = sphi 0, %s167
      %s171 = sphi 0, %s170
      %s187 = sphi 0, %s171
    $region4: #{tpu_custom_call.1} parent=1 // loop_header_branch
      %24 = sbr.rel (%p22) target = $region8
    $region5: #{tpu_custom_call.1} parent=1 // loop_body
      %s26 = ssub.s32 %s21, 1
      %s27 = ssub.s32 %s21, 2
      %s34 = sadd.s32 1, %s29
      %p35 = scmp.ge.s32.totalorder %s34, 1
      %s36 = scalar_select %p35, 0, %s34
      %s37 = sadd.s32 1, %s28
      %s38 = scalar_select %p35, %s37, %s28
      %p39 = scmp.ge.s32.totalorder %s38, 2
      %s40 = scalar_select %p39, 0, %s38
      %s41 = ssub.s32 %s28, %s40
      %s42 = ssub.s32 %s29, %s36
      %s43 = sor.u32 %s41, %s42
      %p44 = scmp.eq.s32.totalorder %s43, 0
      %s46 = sadd.s32 %s45, 1
      %s47 = scalar_select %p44, %s45, %s46
      %p50 = pneg %p44
      %p51 = scmp.eq.s32.totalorder %s21, 1
      %p52 = por %p50, %p51
      %p53 = scmp.ne.s32.totalorder %s45, %s48
      %p54 = scmp.eq.s32.totalorder %s21, 0
      %p55 = por %p53, %p54
      %p56 = scmp.ne.s32.totalorder %s45, %s48
      %p57 = scmp.eq.s32.totalorder %s26, 1
      %p58 = por %p56, %p57
      %p59 = scmp.ne.s32.totalorder %s48, %s49
      %p60 = scmp.eq.s32.totalorder %s26, 0
      %p61 = por %p59, %p60
      %p62 = scmp.ne.s32.totalorder %s48, %s49
      %p63 = scmp.eq.s32.totalorder %s27, 1
      %p64 = por %p62, %p63
      %p66 = scmp.ne.s32.totalorder %s49, %s65
      %p67 = scmp.eq.s32.totalorder %s27, 0
      %p68 = por %p66, %p67
      %s69 = ssub.s32 %s28, %s40
      %p70 = scmp.eq.s32.totalorder %s69, 0
      %s72 = sadd.s32 %s71, 1
      %s73 = scalar_select %p70, %s71, %s72
      %p76 = pneg %p70
      %p77 = scmp.eq.s32.totalorder %s21, 1
      %p78 = por %p76, %p77
      %p79 = scmp.ne.s32.totalorder %s71, %s74
      %p80 = scmp.eq.s32.totalorder %s21, 0
      %p81 = por %p79, %p80
      %p82 = scmp.ne.s32.totalorder %s71, %s74
      %p83 = scmp.eq.s32.totalorder %s26, 1
      %p84 = por %p82, %p83
      %p85 = scmp.ne.s32.totalorder %s74, %s75
      %p86 = scmp.eq.s32.totalorder %s26, 0
      %p87 = por %p85, %p86
      %p88 = scmp.ne.s32.totalorder %s74, %s75
      %p89 = scmp.eq.s32.totalorder %s27, 1
      %p90 = por %p88, %p89
      %p92 = scmp.ne.s32.totalorder %s75, %s91
      %p93 = scmp.eq.s32.totalorder %s27, 0
      %p94 = por %p92, %p93
      %s95 = ssub.s32 %s28, %s40
      %p96 = scmp.eq.s32.totalorder %s95, 0
      %s98 = sadd.s32 %s97, 1
      %s99 = scalar_select %p96, %s97, %s98
      %p102 = pneg %p96
      %p103 = scmp.eq.s32.totalorder %s21, 1
      %p104 = por %p102, %p103
      %p105 = scmp.ne.s32.totalorder %s97, %s100
      %p106 = scmp.eq.s32.totalorder %s21, 0
      %p107 = por %p105, %p106
      %p108 = scmp.ne.s32.totalorder %s97, %s100
      %p109 = scmp.eq.s32.totalorder %s26, 1
      %p110 = por %p108, %p109
      %p111 = scmp.ne.s32.totalorder %s100, %s101
      %p112 = scmp.eq.s32.totalorder %s26, 0
      %p113 = por %p111, %p112
      %p114 = scmp.ne.s32.totalorder %s100, %s101
      %p115 = scmp.eq.s32.totalorder %s27, 1
      %p116 = por %p114, %p115
      %p118 = scmp.ne.s32.totalorder %s101, %s117
      %p119 = scmp.eq.s32.totalorder %s27, 0
      %p120 = por %p118, %p119
      %s122 = sadd.s32 %s121, 1
      %p125 = scmp.eq.s32.totalorder %s21, 1
      %p126 = scmp.ne.s32.totalorder %s121, %s123
      %p127 = scmp.eq.s32.totalorder %s21, 0
      %p128 = por %p126, %p127
      %p129 = scmp.ne.s32.totalorder %s121, %s123
      %p130 = scmp.eq.s32.totalorder %s26, 1
      %p131 = por %p129, %p130
      %p132 = scmp.ne.s32.totalorder %s123, %s124
      %p133 = scmp.eq.s32.totalorder %s26, 0
      %p134 = por %p132, %p133
      %p135 = scmp.ne.s32.totalorder %s123, %s124
      %p136 = scmp.eq.s32.totalorder %s27, 1
      %p137 = por %p135, %p136
      %p139 = scmp.ne.s32.totalorder %s124, %s138
      %p140 = scmp.eq.s32.totalorder %s27, 0
      %p141 = por %p139, %p140
      %s143 = sadd.s32 %s142, 1
      %p146 = scmp.eq.s32.totalorder %s21, 1
      %p147 = scmp.ne.s32.totalorder %s142, %s144
      %p148 = scmp.eq.s32.totalorder %s21, 0
      %p149 = por %p147, %p148
      %p150 = scmp.ne.s32.totalorder %s142, %s144
      %p151 = scmp.eq.s32.totalorder %s26, 1
      %p152 = por %p150, %p151
      %p153 = scmp.ne.s32.totalorder %s144, %s145
      %p154 = scmp.eq.s32.totalorder %s26, 0
      %p155 = por %p153, %p154
      %p156 = scmp.ne.s32.totalorder %s144, %s145
      %p157 = scmp.eq.s32.totalorder %s27, 1
      %p158 = por %p156, %p157
      %p160 = scmp.ne.s32.totalorder %s145, %s159
      %p161 = scmp.eq.s32.totalorder %s27, 0
      %p162 = por %p160, %p161
      %s163 = ssub.s32 %s28, %s40
      %s164 = ssub.s32 %s29, %s36
      %s165 = sor.u32 %s163, %s164
      %p166 = scmp.eq.s32.totalorder %s165, 0
      %s168 = sadd.s32 %s167, 1
      %s169 = scalar_select %p166, %s167, %s168
      %p172 = pneg %p166
      %p173 = scmp.eq.s32.totalorder %s21, 1
      %p174 = por %p172, %p173
      %p175 = scmp.ne.s32.totalorder %s167, %s170
      %p176 = scmp.eq.s32.totalorder %s21, 0
      %p177 = por %p175, %p176
      %p178 = scmp.ne.s32.totalorder %s167, %s170
      %p179 = scmp.eq.s32.totalorder %s26, 1
      %p180 = por %p178, %p179
      %p181 = scmp.ne.s32.totalorder %s170, %s171
      %p182 = scmp.eq.s32.totalorder %s26, 0
      %p183 = por %p181, %p182
      %p184 = scmp.ne.s32.totalorder %s170, %s171
      %p185 = scmp.eq.s32.totalorder %s27, 1
      %p186 = por %p184, %p185
      %p188 = scmp.ne.s32.totalorder %s171, %s187
      %p189 = scmp.eq.s32.totalorder %s27, 0
      %p190 = por %p188, %p189
      %p191 = scmp.le.s32.totalorder 1, %s21
      %p192 = scmp.lt.s32.totalorder %s21, 3
      %p193 = pnand %p191, %p192
      %p194 = pneg %p193
      // Predicated region
      $region9: #{tpu_custom_call.1} parent=5 // pred_check
        _
      $region10: #{tpu_custom_call.1} parent=5 // pred_check_branch
        %196 = sbr.rel (%p193) target = $region12
      $region11: #{tpu_custom_call.1} parent=5 // pred_region
        %s197 = ssub.s32 %s21, 1
        // Predicated region
        $region13: #{tpu_custom_call.1} parent=11 // pred_check
          %p198 = pneg %p134
        $region14: #{tpu_custom_call.1} parent=11 // pred_check_branch
          %200 = sbr.rel (%p198) target = $region16
        $region15: #{tpu_custom_call.1} parent=11 // pred_region
          %202 = vsyncadd [#allocation10], 0
          %s203 = sshll.u32 %s3, 4
          %s204 = int_to_ptr.hbm [resolvable:$true] %s203
          %s205 = sshll.u32 [#allocation9], 4
          %s206 = int_to_ptr.vmem [resolvable:$true] %s205
          %211 = dma.hbm_to_vmem [thread:$0]  %s204, 512, %s206, [#allocation10], 128, 128, 8
        $region16: #{tpu_custom_call.1} parent=11 // pred_fallthru
          _
        // Predicated region
        $region17: #{tpu_custom_call.1} parent=11 // pred_check
          %p212 = pneg %p155
        $region18: #{tpu_custom_call.1} parent=11 // pred_check_branch
          %214 = sbr.rel (%p212) target = $region20
        $region19: #{tpu_custom_call.1} parent=11 // pred_region
          _
        $region20: #{tpu_custom_call.1} parent=11 // pred_fallthru
          _
      $region12: #{tpu_custom_call.1} parent=5 // pred_fallthru
        _
      %p215 = scmp.lt.s32.totalorder %s21, 2
      // Predicated region
      $region21: #{tpu_custom_call.1} parent=5 // pred_check
        %p216 = pneg %p215
      $region22: #{tpu_custom_call.1} parent=5 // pred_check_branch
        %218 = sbr.rel (%p216) target = $region24
      $region23: #{tpu_custom_call.1} parent=5 // pred_region
        // Predicated region
        $region25: #{tpu_custom_call.1} parent=23 // pred_check
          %p219 = pneg %p55
        $region26: #{tpu_custom_call.1} parent=23 // pred_check_branch
          %221 = sbr.rel (%p219) target = $region28
        $region27: #{tpu_custom_call.1} parent=23 // pred_region
          %s222 = sand.u32 %s45, 1
          %s223 = scalar_lea.sflag [#allocation4], %s222
          %s224 = sand.u32 %s45, 1
          %s225 = smul.addr %s224, 32
          %s226 = scalar_lea.vmem [#allocation3], %s225
          %228 = vsyncadd %s223, 0
          %s229 = smul.addr %s28, 4
          %s230 = sadd.s32 %s29, %s229
          %s231 = smul.addr %s230, 8
          %s232 = scalar_lea.hbm %s0, %s231
          %s233 = sshll.u32 %s232, 4
          %s234 = int_to_ptr.hbm [resolvable:$true] %s233
          %s235 = sshll.u32 %s226, 4
          %s236 = int_to_ptr.vmem [resolvable:$true] %s235
          %241 = dma.hbm_to_vmem [thread:$0]  %s234, 512, %s236, %s223, 128, 128, 8
        $region28: #{tpu_custom_call.1} parent=23 // pred_fallthru
          _
        // Predicated region
        $region29: #{tpu_custom_call.1} parent=23 // pred_check
          %p242 = pneg %p81
        $region30: #{tpu_custom_call.1} parent=23 // pred_check_branch
          %244 = sbr.rel (%p242) target = $region32
        $region31: #{tpu_custom_call.1} parent=23 // pred_region
          %s245 = sand.u32 %s21, 1
          %s246 = scalar_lea.sflag [#allocation7], %s245
          %s247 = sand.u32 %s71, 1
          %s248 = smul.addr %s247, 32
          %s249 = scalar_lea.vmem [#allocation6], %s248
          %251 = vsyncadd %s246, 0
          %s252 = smul.addr %s28, 4
          %s253 = smul.addr %s252, 8
          %s254 = scalar_lea.hbm %s1, %s253
          %s255 = sshll.u32 %s254, 4
          %s256 = int_to_ptr.hbm [resolvable:$true] %s255
          %s257 = sshll.u32 %s249, 4
          %s258 = int_to_ptr.vmem [resolvable:$true] %s257
          %263 = dma.hbm_to_vmem [thread:$0]  %s256, 512, %s258, %s246, 128, 128, 8
        $region32: #{tpu_custom_call.1} parent=23 // pred_fallthru
          _
        // Predicated region
        $region33: #{tpu_custom_call.1} parent=23 // pred_check
          %p264 = pneg %p107
        $region34: #{tpu_custom_call.1} parent=23 // pred_check_branch
          %266 = sbr.rel (%p264) target = $region36
        $region35: #{tpu_custom_call.1} parent=23 // pred_region
          %s267 = sand.u32 %s21, 1
          %s268 = scalar_lea.sflag [#allocation7], %s267
          %s269 = sand.u32 %s97, 1
          %s270 = smul.addr %s269, 32
          %s271 = scalar_lea.vmem [#allocation8], %s270
          %273 = vsyncadd %s268, 0
          %s274 = smul.addr %s28, 4
          %s275 = smul.addr %s274, 8
          %s276 = scalar_lea.hbm %s2, %s275
          %s277 = sshll.u32 %s276, 4
          %s278 = int_to_ptr.hbm [resolvable:$true] %s277
          %s279 = sshll.u32 %s271, 4
          %s280 = int_to_ptr.vmem [resolvable:$true] %s279
          %285 = dma.hbm_to_vmem [thread:$0]  %s278, 512, %s280, %s268, 128, 128, 8
        $region36: #{tpu_custom_call.1} parent=23 // pred_fallthru
          _
      $region24: #{tpu_custom_call.1} parent=5 // pred_fallthru
        _
      %p286 = scmp.le.s32.totalorder 1, %s21
      %p287 = scmp.lt.s32.totalorder %s21, 3
      %p288 = pnand %p286, %p287
      %p289 = pneg %p288
      // Predicated region
      $region37: #{tpu_custom_call.1} parent=5 // pred_check
        _
      $region38: #{tpu_custom_call.1} parent=5 // pred_check_branch
        %291 = sbr.rel (%p288) target = $region40
      $region39: #{tpu_custom_call.1} parent=5 // pred_region
        %s292 = ssub.s32 %s21, 1
        %s293 = sand.u32 %s48, 1
        %s294 = scalar_lea.sflag [#allocation4], %s293
        %s295 = sand.u32 %s48, 1
        %s296 = smul.addr %s295, 32
        %s297 = scalar_lea.vmem [#allocation3], %s296
        // Predicated region
        $region41: #{tpu_custom_call.1} parent=39 // pred_check
          %p298 = pneg %p61
        $region42: #{tpu_custom_call.1} parent=39 // pred_check_branch
          %300 = sbr.rel (%p298) target = $region44
        $region43: #{tpu_custom_call.1} parent=39 // pred_region
          %302 = dma.done %s294, 512
        $region44: #{tpu_custom_call.1} parent=39 // pred_fallthru
          _
        %s303 = sand.u32 %s26, 1
        %s304 = scalar_lea.sflag [#allocation7], %s303
        %s305 = sand.u32 %s74, 1
        %s306 = smul.addr %s305, 32
        %s307 = scalar_lea.vmem [#allocation6], %s306
        // Predicated region
        $region45: #{tpu_custom_call.1} parent=39 // pred_check
          %p308 = pneg %p87
        $region46: #{tpu_custom_call.1} parent=39 // pred_check_branch
          %310 = sbr.rel (%p308) target = $region48
        $region47: #{tpu_custom_call.1} parent=39 // pred_region
          %312 = dma.done %s304, 512
        $region48: #{tpu_custom_call.1} parent=39 // pred_fallthru
          _
        %s313 = sand.u32 %s26, 1
        %s314 = scalar_lea.sflag [#allocation7], %s313
        %s315 = sand.u32 %s100, 1
        %s316 = smul.addr %s315, 32
        %s317 = scalar_lea.vmem [#allocation8], %s316
        // Predicated region
        $region49: #{tpu_custom_call.1} parent=39 // pred_check
          %p318 = pneg %p113
        $region50: #{tpu_custom_call.1} parent=39 // pred_check_branch
          %320 = sbr.rel (%p318) target = $region52
        $region51: #{tpu_custom_call.1} parent=39 // pred_region
          %322 = dma.done %s314, 512
        $region52: #{tpu_custom_call.1} parent=39 // pred_fallthru
          _
        // Predicated region
        $region53: #{tpu_custom_call.1} parent=39 // pred_check
          %p323 = pneg %p134
        $region54: #{tpu_custom_call.1} parent=39 // pred_check_branch
          %325 = sbr.rel (%p323) target = $region56
        $region55: #{tpu_custom_call.1} parent=39 // pred_region
          %327 = dma.done [#allocation10], 512
        $region56: #{tpu_custom_call.1} parent=39 // pred_fallthru
          _
        %s328 = sand.u32 %s48, 1
        %s329 = scalar_lea.sflag [#allocation4], %s328
        %s330 = sand.u32 %s48, 1
        %s331 = smul.addr %s330, 32
        %s332 = scalar_lea.vmem [#allocation3], %s331
        %p333 = pneg %p61
        %p334 = pneg %p58
        %s335 = sand.u32 %s26, 1
        %s336 = scalar_lea.sflag [#allocation7], %s335
        %s337 = sand.u32 %s74, 1
        %s338 = smul.addr %s337, 32
        %s339 = scalar_lea.vmem [#allocation6], %s338
        %p340 = pneg %p87
        %p341 = pneg %p84
        %s342 = sand.u32 %s26, 1
        %s343 = scalar_lea.sflag [#allocation7], %s342
        %s344 = sand.u32 %s100, 1
        %s345 = smul.addr %s344, 32
        %s346 = scalar_lea.vmem [#allocation8], %s345
        %p347 = pneg %p113
        %p348 = pneg %p110
        %p349 = pneg %p134
        %p350 = pneg %p131
        %p351 = pneg %p155
        %p352 = pneg %p152
        %p353 = pneg %p183
        %p354 = pneg %p180
        %s355 = sand.u32 %s170, 1
        %s356 = scalar_lea.sflag [#allocation5], %s355
        %s357 = sand.u32 %s170, 1
        %s358 = smul.addr %s357, 8
        %s359 = scalar_lea.vmem [#allocation11], %s358
        %v360 = vld [vmem:[%s297] sm:$0xff]
        %v361 = vmul.f32 %v360, 0.35355338
        %v362 = vld [vmem:[%s307] sm:$0xff]
        %v363 = vld [vmem:[%s317] sm:$0xff]
        %vm364 = vcmask 64512
        %v366 = vsel %vm364, %v361, 0
        %368 = vmatpush.msra.mxu0 0.0
        %369 = vmatpush.msra.mxu0 0.0
        %370 = vmatpush.msra.mxu0 0.0
        %371 = vmatpush.msra.mxu0 0.0
        %372 = vmatpush.msra.mxu0 0.0
        %373 = vmatpush.msra.mxu0 0.0
        %374 = vmatpush.msra.mxu0 0.0
        %375 = vmatpush.msra.mxu0 0.0
        %376 = vmatpush.msra.mxu0 0.0
        %377 = vmatpush.msra.mxu0 0.0
        %378 = vmatpush.msra.mxu0 0.0
        %379 = vmatpush.msra.mxu0 0.0
        %380 = vmatpush.msra.mxu0 0.0
        %381 = vmatpush.msra.mxu0 0.0
        %382 = vmatpush.msra.mxu0 0.0
        %383 = vmatpush.msra.mxu0 %v362
        %384 = vmatmul.f32.gmra.mxu0 %v366
        %v385 = vpop.f32.mrf.mxu0
        %v386 = vadd.f32 0.0, %v385
        %387 = vdwg.mxu0
        %v388 = vsel %vm364, %v386, -inf
        %389 = vmax.xlane.f32.xlu0 %v388
        %v390 = vpop.xlane.xlu0 %389
        %v391 = vsub.f32 %v386, %v390
        %v392 = vmul.f32 %v391, 1.442695
        %v393 = vpow.pop %v392
        %v394 = vsel %vm364, %v393, 0.0
        %395 = vadd.xlane.f32.xlu0 %v394
        %v396 = vpop.xlane.xlu0 %395
        %v397 = vrcp.pop %v396
        %v398 = vmul.f32 %v393, %v397
        %v400 = vsel %vm364, %v398, 0
        %402 = vmatpush.msra.mxu0 0.0
        %403 = vmatpush.msra.mxu0 0.0
        %404 = vmatpush.msra.mxu0 0.0
        %405 = vmatpush.msra.mxu0 0.0
        %406 = vmatpush.msra.mxu0 0.0
        %407 = vmatpush.msra.mxu0 0.0
        %408 = vmatpush.msra.mxu0 0.0
        %409 = vmatpush.msra.mxu0 0.0
        %410 = vmatpush.msra.mxu0 0.0
        %411 = vmatpush.msra.mxu0 0.0
        %412 = vmatpush.msra.mxu0 0.0
        %413 = vmatpush.msra.mxu0 0.0
        %414 = vmatpush.msra.mxu0 0.0
        %415 = vmatpush.msra.mxu0 0.0
        %416 = vmatpush.msra.mxu0 0.0
        %417 = vmatpush.msra.mxu0 %v363
        %418 = vmatmul.f32.gmra.mxu0 %v400
        %v419 = vpop.f32.mrf.mxu0
        %v420 = vadd.f32 0.0, %v419
        %421 = vdwg.mxu0
        %422 = vst.msk [vmem:[#allocation2] sm:$0xff] %vm364, %v420
        %s423 = scalar_lea.vmem %s297, 8 [#allocation3]
        %v424 = vld [vmem:[%s423] sm:$0xff]
        %v425 = vmul.f32 %v424, 0.35355338
        %s426 = scalar_lea.vmem %s307, 8 [#allocation6]
        %v427 = vld [vmem:[%s426] sm:$0xff]
        %s428 = scalar_lea.vmem %s317, 8 [#allocation8]
        %v429 = vld [vmem:[%s428] sm:$0xff]
        %v431 = vsel %vm364, %v425, 0
        %433 = vmatpush.msra.mxu0 0.0
        %434 = vmatpush.msra.mxu0 0.0
        %435 = vmatpush.msra.mxu0 0.0
        %436 = vmatpush.msra.mxu0 0.0
        %437 = vmatpush.msra.mxu0 0.0
        %438 = vmatpush.msra.mxu0 0.0
        %439 = vmatpush.msra.mxu0 0.0
        %440 = vmatpush.msra.mxu0 0.0
        %441 = vmatpush.msra.mxu0 0.0
        %442 = vmatpush.msra.mxu0 0.0
        %443 = vmatpush.msra.mxu0 0.0
        %444 = vmatpush.msra.mxu0 0.0
        %445 = vmatpush.msra.mxu0 0.0
        %446 = vmatpush.msra.mxu0 0.0
        %447 = vmatpush.msra.mxu0 0.0
        %448 = vmatpush.msra.mxu0 %v427
        %449 = vmatmul.f32.gmra.mxu0 %v431
        %v450 = vpop.f32.mrf.mxu0
        %v451 = vadd.f32 0.0, %v450
        %452 = vdwg.mxu0
        %v453 = vsel %vm364, %v451, -inf
        %454 = vmax.xlane.f32.xlu0 %v453
        %v455 = vpop.xlane.xlu0 %454
        %v456 = vsub.f32 %v451, %v455
        %v457 = vmul.f32 %v456, 1.442695
        %v458 = vpow.pop %v457
        %v459 = vsel %vm364, %v458, 0.0
        %460 = vadd.xlane.f32.xlu0 %v459
        %v461 = vpop.xlane.xlu0 %460
        %v462 = vrcp.pop %v461
        %v463 = vmul.f32 %v458, %v462
        %v465 = vsel %vm364, %v463, 0
        %467 = vmatpush.msra.mxu0 0.0
        %468 = vmatpush.msra.mxu0 0.0
        %469 = vmatpush.msra.mxu0 0.0
        %470 = vmatpush.msra.mxu0 0.0
        %471 = vmatpush.msra.mxu0 0.0
        %472 = vmatpush.msra.mxu0 0.0
        %473 = vmatpush.msra.mxu0 0.0
        %474 = vmatpush.msra.mxu0 0.0
        %475 = vmatpush.msra.mxu0 0.0
        %476 = vmatpush.msra.mxu0 0.0
        %477 = vmatpush.msra.mxu0 0.0
        %478 = vmatpush.msra.mxu0 0.0
        %479 = vmatpush.msra.mxu0 0.0
        %480 = vmatpush.msra.mxu0 0.0
        %481 = vmatpush.msra.mxu0 0.0
        %482 = vmatpush.msra.mxu0 %v429
        %483 = vmatmul.f32.gmra.mxu0 %v465
        %v484 = vpop.f32.mrf.mxu0
        %v485 = vadd.f32 0.0, %v484
        %486 = vdwg.mxu0
        %488 = vrot.lane.b32.xlu0 %v485, 8
        %v489 = vpop.permute.xlu0 %488
        %vm491 = vcmask 130112
        %492 = vst.msk [vmem:[#allocation2] sm:$0xff] %vm491, %v489
        %s493 = scalar_lea.vmem %s297, 16 [#allocation3]
        %v494 = vld [vmem:[%s493] sm:$0xff]
        %v495 = vmul.f32 %v494, 0.35355338
        %s496 = scalar_lea.vmem %s307, 16 [#allocation6]
        %v497 = vld [vmem:[%s496] sm:$0xff]
        %s498 = scalar_lea.vmem %s317, 16 [#allocation8]
        %v499 = vld [vmem:[%s498] sm:$0xff]
        %v501 = vsel %vm364, %v495, 0
        %503 = vmatpush.msra.mxu0 0.0
        %504 = vmatpush.msra.mxu0 0.0
        %505 = vmatpush.msra.mxu0 0.0
        %506 = vmatpush.msra.mxu0 0.0
        %507 = vmatpush.msra.mxu0 0.0
        %508 = vmatpush.msra.mxu0 0.0
        %509 = vmatpush.msra.mxu0 0.0
        %510 = vmatpush.msra.mxu0 0.0
        %511 = vmatpush.msra.mxu0 0.0
        %512 = vmatpush.msra.mxu0 0.0
        %513 = vmatpush.msra.mxu0 0.0
        %514 = vmatpush.msra.mxu0 0.0
        %515 = vmatpush.msra.mxu0 0.0
        %516 = vmatpush.msra.mxu0 0.0
        %517 = vmatpush.msra.mxu0 0.0
        %518 = vmatpush.msra.mxu0 %v497
        %519 = vmatmul.f32.gmra.mxu0 %v501
        %v520 = vpop.f32.mrf.mxu0
        %v521 = vadd.f32 0.0, %v520
        %522 = vdwg.mxu0
        %v523 = vsel %vm364, %v521, -inf
        %524 = vmax.xlane.f32.xlu0 %v523
        %v525 = vpop.xlane.xlu0 %524
        %v526 = vsub.f32 %v521, %v525
        %v527 = vmul.f32 %v526, 1.442695
        %v528 = vpow.pop %v527
        %v529 = vsel %vm364, %v528, 0.0
        %530 = vadd.xlane.f32.xlu0 %v529
        %v531 = vpop.xlane.xlu0 %530
        %v532 = vrcp.pop %v531
        %v533 = vmul.f32 %v528, %v532
        %v535 = vsel %vm364, %v533, 0
        %537 = vmatpush.msra.mxu0 0.0
        %538 = vmatpush.msra.mxu0 0.0
        %539 = vmatpush.msra.mxu0 0.0
        %540 = vmatpush.msra.mxu0 0.0
        %541 = vmatpush.msra.mxu0 0.0
        %542 = vmatpush.msra.mxu0 0.0
        %543 = vmatpush.msra.mxu0 0.0
        %544 = vmatpush.msra.mxu0 0.0
        %545 = vmatpush.msra.mxu0 0.0
        %546 = vmatpush.msra.mxu0 0.0
        %547 = vmatpush.msra.mxu0 0.0
        %548 = vmatpush.msra.mxu0 0.0
        %549 = vmatpush.msra.mxu0 0.0
        %550 = vmatpush.msra.mxu0 0.0
        %551 = vmatpush.msra.mxu0 0.0
        %552 = vmatpush.msra.mxu0 %v499
        %553 = vmatmul.f32.gmra.mxu0 %v535
        %v554 = vpop.f32.mrf.mxu0
        %v555 = vadd.f32 0.0, %v554
        %556 = vdwg.mxu0
        %558 = vrot.lane.b32.xlu0 %v555, 16
        %v559 = vpop.permute.xlu0 %558
        %vm561 = vcmask 195712
        %562 = vst.msk [vmem:[#allocation2] sm:$0xff] %vm561, %v559
        %s563 = scalar_lea.vmem %s297, 24 [#allocation3]
        %v564 = vld [vmem:[%s563] sm:$0xff]
        %v565 = vmul.f32 %v564, 0.35355338
        %s566 = scalar_lea.vmem %s307, 24 [#allocation6]
        %v567 = vld [vmem:[%s566] sm:$0xff]
        %s568 = scalar_lea.vmem %s317, 24 [#allocation8]
        %v569 = vld [vmem:[%s568] sm:$0xff]
        %v571 = vsel %vm364, %v565, 0
        %573 = vmatpush.msra.mxu0 0.0
        %574 = vmatpush.msra.mxu0 0.0
        %575 = vmatpush.msra.mxu0 0.0
        %576 = vmatpush.msra.mxu0 0.0
        %577 = vmatpush.msra.mxu0 0.0
        %578 = vmatpush.msra.mxu0 0.0
        %579 = vmatpush.msra.mxu0 0.0
        %580 = vmatpush.msra.mxu0 0.0
        %581 = vmatpush.msra.mxu0 0.0
        %582 = vmatpush.msra.mxu0 0.0
        %583 = vmatpush.msra.mxu0 0.0
        %584 = vmatpush.msra.mxu0 0.0
        %585 = vmatpush.msra.mxu0 0.0
        %586 = vmatpush.msra.mxu0 0.0
        %587 = vmatpush.msra.mxu0 0.0
        %588 = vmatpush.msra.mxu0 %v567
        %589 = vmatmul.f32.gmra.mxu0 %v571
        %v590 = vpop.f32.mrf.mxu0
        %v591 = vadd.f32 0.0, %v590
        %592 = vdwg.mxu0
        %v593 = vsel %vm364, %v591, -inf
        %594 = vmax.xlane.f32.xlu0 %v593
        %v595 = vpop.xlane.xlu0 %594
        %v596 = vsub.f32 %v591, %v595
        %v597 = vmul.f32 %v596, 1.442695
        %v598 = vpow.pop %v597
        %v599 = vsel %vm364, %v598, 0.0
        %600 = vadd.xlane.f32.xlu0 %v599
        %v601 = vpop.xlane.xlu0 %600
        %v602 = vrcp.pop %v601
        %v603 = vmul.f32 %v598, %v602
        %v605 = vsel %vm364, %v603, 0
        %607 = vmatpush.msra.mxu0 0.0
        %608 = vmatpush.msra.mxu0 0.0
        %609 = vmatpush.msra.mxu0 0.0
        %610 = vmatpush.msra.mxu0 0.0
        %611 = vmatpush.msra.mxu0 0.0
        %612 = vmatpush.msra.mxu0 0.0
        %613 = vmatpush.msra.mxu0 0.0
        %614 = vmatpush.msra.mxu0 0.0
        %615 = vmatpush.msra.mxu0 0.0
        %616 = vmatpush.msra.mxu0 0.0
        %617 = vmatpush.msra.mxu0 0.0
        %618 = vmatpush.msra.mxu0 0.0
        %619 = vmatpush.msra.mxu0 0.0
        %620 = vmatpush.msra.mxu0 0.0
        %621 = vmatpush.msra.mxu0 0.0
        %622 = vmatpush.msra.mxu0 %v569
        %623 = vmatmul.f32.gmra.mxu0 %v605
        %v624 = vpop.f32.mrf.mxu0
        %v625 = vadd.f32 0.0, %v624
        %626 = vdwg.mxu0
        %628 = vrot.lane.b32.xlu0 %v625, 24
        %v629 = vpop.permute.xlu0 %628
        %vm631 = vcmask 261312
        %632 = vst.msk [vmem:[#allocation2] sm:$0xff] %vm631, %v629
        %v633 = vld [vmem:[#allocation2] sm:$0xff]
        %v634 = vld [vmem:[#allocation9] sm:$0xff]
        %v635 = vld [vmem:[#allocation9 + $0x8] sm:$0xff]
        %v636 = vld [vmem:[#allocation9 + $0x10] sm:$0xff]
        %v637 = vld [vmem:[#allocation9 + $0x18] sm:$0xff]
        %v638 = vld [vmem:[%s4] sm:$0x1]
        %v640 = vperm.slane %v638, 0
        %vm642 = vcmask 261120
        %v644 = vsel %vm642, %v633, 0
        %646 = vmatpush.msra.mxu0 0.0
        %647 = vmatpush.msra.mxu0 0.0
        %648 = vmatpush.msra.mxu0 0.0
        %649 = vmatpush.msra.mxu0 0.0
        %650 = vmatpush.msra.mxu0 0.0
        %651 = vmatpush.msra.mxu0 0.0
        %652 = vmatpush.msra.mxu0 0.0
        %653 = vmatpush.msra.mxu0 0.0
        %654 = vmatpush.msra.mxu0 0.0
        %655 = vmatpush.msra.mxu0 0.0
        %656 = vmatpush.msra.mxu0 0.0
        %657 = vmatpush.msra.mxu0 0.0
        %658 = vmatpush.msra.mxu0 %v637
        %659 = vmatpush.msra.mxu0 %v636
        %660 = vmatpush.msra.mxu0 %v635
        %661 = vmatpush.msra.mxu0 %v634
        %662 = vmatmul.f32.gmra.mxu0 %v644
        %v663 = vpop.f32.mrf.mxu0
        %v664 = vadd.f32 %v640, %v663
        %665 = vdwg.mxu0
        %666 = vst.msk [vmem:[%s359] sm:$0xff] %vm642, %v664
        %s667 = sand.u32 %s170, 1
        %s668 = scalar_lea.sflag [#allocation5], %s667
        %s669 = sand.u32 %s170, 1
        %s670 = smul.addr %s669, 8
        %s671 = scalar_lea.vmem [#allocation11], %s670
        // Predicated region
        $region57: #{tpu_custom_call.1} parent=39 // pred_check
          %p672 = pneg %p180
        $region58: #{tpu_custom_call.1} parent=39 // pred_check_branch
          %674 = sbr.rel (%p672) target = $region60
        $region59: #{tpu_custom_call.1} parent=39 // pred_region
          %676 = vsyncadd %s668, 0
          %s677 = sadd.s32 %s31, %s30
          %s678 = smul.addr %s677, 8
          %s679 = scalar_lea.hbm %s5, %s678
          %s681 = sshll.u32 %s671, 4
          %s682 = int_to_ptr.vmem [resolvable:$true] %s681
          %s683 = sshll.u32 %s679, 4
          %s684 = int_to_ptr.hbm [resolvable:$true] %s683
          %686 = dma.vmem_to_hbm [thread:$0]  %s682, 128, %s684, %s668
        $region60: #{tpu_custom_call.1} parent=39 // pred_fallthru
          _
      $region40: #{tpu_custom_call.1} parent=5 // pred_fallthru
        _
      %p687 = scmp.le.s32.totalorder 2, %s21
      // Predicated region
      $region61: #{tpu_custom_call.1} parent=5 // pred_check
        %p688 = pneg %p687
      $region62: #{tpu_custom_call.1} parent=5 // pred_check_branch
        %690 = sbr.rel (%p688) target = $region64
      $region63: #{tpu_custom_call.1} parent=5 // pred_region
        %s691 = ssub.s32 %s21, 2
        // Predicated region
        $region65: #{tpu_custom_call.1} parent=63 // pred_check
          %p692 = pneg %p186
        $region66: #{tpu_custom_call.1} parent=63 // pred_check_branch
          %694 = sbr.rel (%p692) target = $region68
        $region67: #{tpu_custom_call.1} parent=63 // pred_region
          %s695 = sand.u32 %s171, 1
          %s696 = scalar_lea.sflag [#allocation5], %s695
          %s697 = sand.u32 %s171, 1
          %s698 = smul.addr %s697, 8
          %s699 = scalar_lea.vmem [#allocation11], %s698
          %701 = dma.done %s696, 128
        $region68: #{tpu_custom_call.1} parent=63 // pred_fallthru
          _
      $region64: #{tpu_custom_call.1} parent=5 // pred_fallthru
        _
    $region6: #{tpu_custom_call.1} parent=1 // loop_footer
      %s25 = sadd.s32 1, %s21
    $region7: #{tpu_custom_call.1} parent=1 // loop_footer_branch
      %20 = sbr.rel target = $region3
    $region8: #{tpu_custom_call.1} parent=1 // loop_exit
      _
    %702 = vsyncpa [#allocation4], 1
    %s703 = scalar_lea.sflag [#allocation4], 1
    %704 = vsyncpa %s703, 1
    %705 = vsyncpa [#allocation7], 1
    %s706 = scalar_lea.sflag [#allocation7], 1
    %707 = vsyncpa %s706, 1
    %708 = vsyncpa [#allocation10], 1
    %709 = vsyncpa [#allocation5], 1
    %s710 = scalar_lea.sflag [#allocation5], 1
    %711 = vsyncpa %s710, 1

</llo_original>
